<compile_context>
chip_gen: v5e
topology: v5e:2x2
jax: 0.10.0
libtpu: 0.0.40
codegen_flags: <defaults>
</compile_context>

<pallas_src>
import functools

import jax
import jax.numpy as jnp
from jax.experimental import pallas as pl
from jax.experimental.pallas import tpu as pltpu

BN_EPS = 1e-5
LEAKY_SLOPE = 0.01
LANE = 128
ROW_TILE = 256            # row/contraction tile: multiple of 256 fills the
                          # 2x256^2 MXU on v6e/v7x (and is a 128-multiple for v5e)
VMEM_CAP = 64 * 1024 * 1024  # v7x physical VMEM ceiling (v5e/v6e have 128 MiB)


def _round_up(x, m):
    return ((x + m - 1) // m) * m


# ---------------------------------------------------------------------------
# Stage 1 kernel: BatchNorm (training batch stats, affine folded into W/b)
# followed by the Linear projection.  O(N*D*F) work -> tiny next to the
# adjacency matmul, so a single full-resident call is appropriate.
# ---------------------------------------------------------------------------
def bn_linear_kernel(h_ref, w_ref, b_ref, o_ref, *, inv_n):
    h = h_ref[...]                                            # (Np, Dp) f32
    # Statistics over the TRUE N rows: padded rows of H are zero, so the sums
    # are unaffected; divide by the real N via the baked-in inv_n constant.
    mean = jnp.sum(h, axis=0, keepdims=True) * inv_n          # (1, Dp)
    e2 = jnp.sum(h * h, axis=0, keepdims=True) * inv_n        # one-pass E[h^2]
    var = jnp.maximum(e2 - mean * mean, 0.0)                  # clamp cancellation
    h_bn = (h - mean) * jax.lax.rsqrt(var + BN_EPS)
    # Linear (gamma/beta already folded into w_ref / b_ref by gcn_prepare).
    h_lin = jnp.dot(h_bn, w_ref[...], preferred_element_type=jnp.float32)
    h_lin = h_lin + b_ref[...]
    # Emit bf16 so the O(N^2) adjacency matmul runs natively on the MXU.
    o_ref[...] = h_lin.astype(o_ref.dtype)


# ---------------------------------------------------------------------------
# Stage 2 kernel: out_tile = LeakyReLU(A_hat_tile @ H_lin), row-tiled grid.
# A_hat row-tiles are double-buffered by the pipeline (DMA overlaps the MXU),
# H_lin is resident across grid steps (constant index_map), and the grid axis
# is "parallel" so v7x shards it across both TensorCores.
# ---------------------------------------------------------------------------
def adj_kernel(a_ref, hl_ref, o_ref):
    out = jnp.dot(a_ref[...], hl_ref[...], preferred_element_type=jnp.float32)
    o_ref[...] = jnp.where(out >= 0, out, LEAKY_SLOPE * out)


# ---------------------------------------------------------------------------
# One-time preparation (parameters + adjacency).  Do NOT redo per forward.
# ---------------------------------------------------------------------------
def gcn_prepare(A, gamma, beta, W, b):
    """A: (N, N) adjacency (self-loops added here); gamma/beta: (D,);
    W: (D, F) = transposed torch Linear weight; b: (F,)."""
    N = A.shape[0]
    D, F = W.shape
    Np = _round_up(N, ROW_TILE)
    Dp = _round_up(D, LANE)
    Fp = _round_up(F, LANE)

    # A_hat = A + I, zero-padded to (Np, Np); small-integer values are exactly
    # representable in bf16 -> lossless cast, halves the dominant HBM traffic.
    A_hat = A.astype(jnp.float32) + jnp.eye(N, dtype=jnp.float32)
    A_p = jnp.pad(A_hat, ((0, Np - N), (0, Np - N))).astype(jnp.bfloat16)

    # Fold the static BatchNorm affine into the Linear parameters:
    #   (h_bn*gamma + beta) @ W + b == h_bn @ (diag(gamma) @ W) + (beta @ W + b)
    W_eff = gamma[:, None] * W
    b_eff = beta @ W + b
    W_p = jnp.pad(W_eff, ((0, Dp - D), (0, Fp - F))).astype(jnp.float32)
    b_p = jnp.pad(b_eff, (0, Fp - F)).reshape(1, Fp).astype(jnp.float32)

    return dict(A_p=A_p, W_p=W_p, b_p=b_p,
                N=N, D=D, F=F, Np=Np, Dp=Dp, Fp=Fp)


def gcn_layer_forward(H, params):
    N, D, F = params["N"], params["D"], params["F"]
    Np, Dp, Fp = params["Np"], params["Dp"], params["Fp"]
    A_p, W_p, b_p = params["A_p"], params["W_p"], params["b_p"]
    assert H.shape == (N, D)

    # Zero padding is an exact no-op (see kernel comments).
    H_p = jnp.pad(H.astype(jnp.float32), ((0, Np - N), (0, Dp - D)))

    # ---- stage 1: BN + Linear -> H_lin (Np, Fp) bf16 -----------------------
    vmem1 = 2 * (Np * Dp * 4 + Dp * Fp * 4 + Fp * 4 + Np * Fp * 2) + (1 << 20)
    h_lin = pl.pallas_call(
        functools.partial(bn_linear_kernel, inv_n=1.0 / float(N)),
        out_shape=jax.ShapeDtypeStruct((Np, Fp), jnp.bfloat16),
        in_specs=[
            pl.BlockSpec(memory_space=pltpu.MemorySpace.VMEM),   # H (padded)
            pl.BlockSpec(memory_space=pltpu.MemorySpace.VMEM),   # W (folded)
            pl.BlockSpec(memory_space=pltpu.MemorySpace.VMEM),   # b (folded)
        ],
        out_specs=pl.BlockSpec(memory_space=pltpu.MemorySpace.VMEM),
        compiler_params=pltpu.CompilerParams(
            vmem_limit_bytes=min(vmem1, VMEM_CAP)),
        cost_estimate=pl.CostEstimate(
            flops=2 * Np * Dp * Fp + 6 * Np * Dp,
            transcendentals=Dp,
            bytes_accessed=4 * (Np * Dp + Dp * Fp + Fp) + 2 * Np * Fp),
    )(H_p, W_p, b_p)

    # ---- stage 2: LeakyReLU(A_hat @ H_lin), row-tiled, megacore-parallel ----
    tm = ROW_TILE
    vmem2 = 2 * (tm * Np * 2 + Np * Fp * 2 + tm * Fp * 4) + (1 << 20)
    out_p = pl.pallas_call(
        adj_kernel,
        out_shape=jax.ShapeDtypeStruct((Np, Fp), jnp.float32),
        grid=(Np // tm,),
        in_specs=[
            pl.BlockSpec((tm, Np), lambda i: (i, 0)),            # A_hat row tile
            pl.BlockSpec((Np, Fp), lambda i: (0, 0)),            # H_lin resident
        ],
        out_specs=pl.BlockSpec((tm, Fp), lambda i: (i, 0)),
        compiler_params=pltpu.CompilerParams(
            dimension_semantics=("parallel",),
            vmem_limit_bytes=min(vmem2, VMEM_CAP)),
        cost_estimate=pl.CostEstimate(
            flops=2 * Np * Np * Fp,
            transcendentals=0,
            bytes_accessed=2 * (Np * Np + Np * Fp) + 4 * Np * Fp),
    )(A_p, h_lin)

    return out_p[:N, :F]


# ---------------------------------------------------------------------------
# Pure-JAX f32 reference of the PyTorch module (training-mode BatchNorm).
# ---------------------------------------------------------------------------
def reference_forward(H, A, gamma, beta, W, b):
    A_hat = A + jnp.eye(A.shape[0], dtype=A.dtype)
    mean = jnp.mean(H, axis=0, keepdims=True)
    var = jnp.mean((H - mean) ** 2, axis=0, keepdims=True)
    h_bn = (H - mean) / jnp.sqrt(var + BN_EPS) * gamma + beta
    h_lin = h_bn @ W + b
    out = A_hat @ h_lin
    return jnp.where(out >= 0, out, LEAKY_SLOPE * out)


if __name__ == "__main__":
    # Small shapes consistent with the module: N nodes, input_dim, output_dim.
    N, INPUT_DIM, OUTPUT_DIM = 64, 32, 16

    key = jax.random.PRNGKey(0)
    k_h, k_a, k_w, k_b, k_g, k_bt = jax.random.split(key, 6)

    # Node features H: (N, input_dim)
    H = jax.random.normal(k_h, (N, INPUT_DIM), dtype=jnp.float32)

    # Random symmetric {0,1} adjacency (self-loops added inside gcn_prepare).
    A_rand = (jax.random.uniform(k_a, (N, N)) > 0.8).astype(jnp.float32)
    A = jnp.maximum(A_rand, A_rand.T)

    # BatchNorm1d affine params (non-trivial values to exercise the fold).
    gamma = 1.0 + 0.1 * jax.random.normal(k_g, (INPUT_DIM,), dtype=jnp.float32)
    beta = 0.1 * jax.random.normal(k_bt, (INPUT_DIM,), dtype=jnp.float32)

    # Linear(input_dim -> output_dim) parameters (torch-style uniform init).
    bound = 1.0 / jnp.sqrt(jnp.float32(INPUT_DIM))
    W = jax.random.uniform(k_w, (INPUT_DIM, OUTPUT_DIM), dtype=jnp.float32,
                           minval=-bound, maxval=bound)
    b = jax.random.uniform(k_b, (OUTPUT_DIM,), dtype=jnp.float32,
                           minval=-bound, maxval=bound)

    params = gcn_prepare(A, gamma, beta, W, b)          # one-time prep
    out = gcn_layer_forward(H, params)
    out = jax.block_until_ready(out)

    ref = reference_forward(H, A, gamma, beta, W, b)
    assert out.shape == (N, OUTPUT_DIM)
    # Tolerance loosened vs pure-f32 because H_lin is fed to the adjacency
    # matmul in bf16 (A_hat's bf16 cast is exact; accumulation stays f32).
    assert jnp.allclose(out, ref, atol=3e-2, rtol=2e-2), "mismatch vs reference"

    print("KERNEL_OK")
</pallas_src>

<mosaic_0001>
module attributes {stable_mosaic.version = 11 : i64} {
  func.func @bn_linear_kernel(%arg0: memref<256x128xf32, #tpu.memory_space<vmem>>, %arg1: memref<128x128xf32, #tpu.memory_space<vmem>>, %arg2: memref<1x128xf32, #tpu.memory_space<vmem>>, %arg3: memref<256x128xbf16, #tpu.memory_space<vmem>>) attributes {dimension_semantics = [], scalar_prefetch = 0 : i64, scratch_operands = 0 : i64, tpu.core_type = #tpu.core_type<tc>} {
    %c0 = arith.constant 0 : index
    %c0_0 = arith.constant 0 : index
    %0 = vector.load %arg0[%c0, %c0_0] : memref<256x128xf32, #tpu.memory_space<vmem>>, vector<256x128xf32>
    %cst = arith.constant dense<0.000000e+00> : vector<128xf32>
    %1 = vector.multi_reduction <add>, %0, %cst [0] : vector<256x128xf32> to vector<128xf32>
    %2 = vector.shape_cast %1 : vector<128xf32> to vector<1x128xf32>
    %cst_1 = arith.constant 1.562500e-02 : f32
    %3 = vector.broadcast %cst_1 : f32 to vector<1x128xf32>
    %4 = arith.mulf %2, %3 : vector<1x128xf32>
    %5 = arith.mulf %0, %0 : vector<256x128xf32>
    %cst_2 = arith.constant dense<0.000000e+00> : vector<128xf32>
    %6 = vector.multi_reduction <add>, %5, %cst_2 [0] : vector<256x128xf32> to vector<128xf32>
    %7 = vector.shape_cast %6 : vector<128xf32> to vector<1x128xf32>
    %cst_3 = arith.constant 1.562500e-02 : f32
    %8 = vector.broadcast %cst_3 : f32 to vector<1x128xf32>
    %9 = arith.mulf %7, %8 : vector<1x128xf32>
    %10 = arith.mulf %4, %4 : vector<1x128xf32>
    %11 = arith.subf %9, %10 : vector<1x128xf32>
    %cst_4 = arith.constant 0.000000e+00 : f32
    %12 = vector.broadcast %cst_4 : f32 to vector<1x128xf32>
    %13 = arith.maximumf %11, %12 : vector<1x128xf32>
    %14 = vector.broadcast %4 : vector<1x128xf32> to vector<256x128xf32>
    %15 = arith.subf %0, %14 : vector<256x128xf32>
    %cst_5 = arith.constant 9.99999974E-6 : f32
    %16 = vector.broadcast %cst_5 : f32 to vector<1x128xf32>
    %17 = arith.addf %13, %16 : vector<1x128xf32>
    %18 = math.rsqrt %17 : vector<1x128xf32>
    %19 = vector.broadcast %18 : vector<1x128xf32> to vector<256x128xf32>
    %20 = arith.mulf %15, %19 : vector<256x128xf32>
    %c0_6 = arith.constant 0 : index
    %c0_7 = arith.constant 0 : index
    %21 = vector.load %arg1[%c0_6, %c0_7] : memref<128x128xf32, #tpu.memory_space<vmem>>, vector<128x128xf32>
    %cst_8 = arith.constant dense<0.000000e+00> : vector<256x128xf32>
    %22 = tpu.matmul %20, %21, %cst_8 {dimension_numbers = #tpu.dot_dimension_numbers<[1], [0], [0], [1], [0, 0, 1, 1], [], []>} : vector<256x128xf32>, vector<128x128xf32>, vector<256x128xf32> -> vector<256x128xf32>
    %c0_9 = arith.constant 0 : index
    %c0_10 = arith.constant 0 : index
    %23 = vector.load %arg2[%c0_9, %c0_10] : memref<1x128xf32, #tpu.memory_space<vmem>>, vector<1x128xf32>
    %24 = vector.broadcast %23 : vector<1x128xf32> to vector<256x128xf32>
    %25 = arith.addf %22, %24 : vector<256x128xf32>
    %26 = arith.truncf %25 : vector<256x128xf32> to vector<256x128xbf16>
    %c0_11 = arith.constant 0 : index
    %c0_12 = arith.constant 0 : index
    %27 = vector.load %arg3[%c0_11, %c0_12] : memref<256x128xbf16, #tpu.memory_space<vmem>>, vector<256x128xbf16>
    tpu.vector_store %arg3[%c0_11, %c0_12], %26 {strides = array<i32>} : memref<256x128xbf16, #tpu.memory_space<vmem>>, vector<256x128xbf16>,
    return
  }
}

</mosaic_0001>

<llo_original>
// kernel: tpu_custom_call.1
$region0: #{tpu_custom_call.1}
  #allocation0 [shape = 'u32[]', space=smem, size = 0x4, offset = 0x4, fixed_abs, tag = 'smem constant byte address 0x4 - core index']
  #allocation1 [shape = 'u32[72,128]{1,0:T(1,128)}', space=vmem, size = 0x9000, scoped, tag = 'internal scratch']
  %s0 = inlined_call_operand.hbm [shape: f32[256,128], index: 0, kind: input, shape index: {}]
  %s1 = inlined_call_operand.hbm [shape: f32[128,128], index: 1, kind: input, shape index: {}]
  %s2 = inlined_call_operand.vmem [shape: f32[1,128], index: 2, kind: input, shape index: {}]
  %s3 = inlined_call_operand.hbm [shape: bf16[256,128], index: 3, kind: output, shape index: {}]
  %s4 = sld [smem:[#allocation0]]
  $region30: #{tpu_custom_call.1} parent=0
    _
  %s6 = ssub.s32 1, %s4
  %s7 = scalar_select 0, %s6, %s4
  $region1: #{tpu_custom_call.1} parent=0
    #allocation2 [shape = 'u8[131072]{0}', space=vmem, size = 0x20000, scoped, tag = 'input window, operand 0, single buffered']
    #allocation3 [shape = 's32[1]{0}', space=sflag, size = 0x4, scoped, tag = 'scoped memory for tpu_custom_call.1']
    #allocation4 [shape = 's32[1]{0}', space=sflag, size = 0x4, scoped, tag = 'scoped memory for tpu_custom_call.1']
    #allocation5 [shape = 'u8[65536]{0}', space=vmem, size = 0x10000, scoped, tag = 'input window, operand 1, single buffered']
    #allocation6 [shape = 's32[1]{0}', space=sflag, size = 0x4, scoped, tag = 'scoped memory for tpu_custom_call.1']
    #allocation7 [shape = 'u8[65536]{0}', space=vmem, size = 0x10000, scoped, tag = 'output window, operand 0, single buffered']
    %8 = vsyncpa [#allocation3], 0
    %9 = vsyncpa [#allocation6], 0
    %10 = vsyncpa [#allocation4], 0
    // Predicated region
    $region2: #{tpu_custom_call.1} parent=1 // pred_check
      _
    $region3: #{tpu_custom_call.1} parent=1 // pred_check_branch
      %12 = sbr.rel (0) target = $region5
    $region4: #{tpu_custom_call.1} parent=1 // pred_region
      %14 = vsyncadd [#allocation3], 0
      %s15 = sshll.u32 %s0, 4
      %s16 = int_to_ptr.hbm [resolvable:$true] %s15
      %s17 = sshll.u32 [#allocation2], 4
      %s18 = int_to_ptr.vmem [resolvable:$true] %s17
      %23 = dma.hbm_to_vmem [thread:$0]  %s16, 4096, %s18, [#allocation3], 128, 128, 8
    $region5: #{tpu_custom_call.1} parent=1 // pred_fallthru
      _
    // Predicated region
    $region6: #{tpu_custom_call.1} parent=1 // pred_check
      _
    $region7: #{tpu_custom_call.1} parent=1 // pred_check_branch
      %25 = sbr.rel (0) target = $region9
    $region8: #{tpu_custom_call.1} parent=1 // pred_region
      %27 = vsyncadd [#allocation6], 0
      %s28 = sshll.u32 %s1, 4
      %s29 = int_to_ptr.hbm [resolvable:$true] %s28
      %s30 = sshll.u32 [#allocation5], 4
      %s31 = int_to_ptr.vmem [resolvable:$true] %s30
      %36 = dma.hbm_to_vmem [thread:$0]  %s29, 2048, %s31, [#allocation6], 128, 128, 8
    $region9: #{tpu_custom_call.1} parent=1 // pred_fallthru
      _
    // Predicated region
    $region10: #{tpu_custom_call.1} parent=1 // pred_check
      _
    $region11: #{tpu_custom_call.1} parent=1 // pred_check_branch
      %38 = sbr.rel (0) target = $region13
    $region12: #{tpu_custom_call.1} parent=1 // pred_region
      _
    $region13: #{tpu_custom_call.1} parent=1 // pred_fallthru
      _
    // Predicated region
    $region14: #{tpu_custom_call.1} parent=1 // pred_check
      _
    $region15: #{tpu_custom_call.1} parent=1 // pred_check_branch
      %40 = sbr.rel (0) target = $region17
    $region16: #{tpu_custom_call.1} parent=1 // pred_region
      %42 = dma.done [#allocation3], 4096
    $region17: #{tpu_custom_call.1} parent=1 // pred_fallthru
      _
    // Predicated region
    $region18: #{tpu_custom_call.1} parent=1 // pred_check
      _
    $region19: #{tpu_custom_call.1} parent=1 // pred_check_branch
      %44 = sbr.rel (0) target = $region21
    $region20: #{tpu_custom_call.1} parent=1 // pred_region
      %46 = dma.done [#allocation6], 2048
    $region21: #{tpu_custom_call.1} parent=1 // pred_fallthru
      _
    %v47 = vld [vmem:[#allocation2] sm:$0xff]
    %v48 = vld [vmem:[#allocation2 + $0x8] sm:$0xff]
    %v49 = vld [vmem:[#allocation2 + $0x10] sm:$0xff]
    %v50 = vld [vmem:[#allocation2 + $0x18] sm:$0xff]
    %v51 = vld [vmem:[#allocation2 + $0x20] sm:$0xff]
    %v52 = vld [vmem:[#allocation2 + $0x28] sm:$0xff]
    %v53 = vld [vmem:[#allocation2 + $0x30] sm:$0xff]
    %v54 = vld [vmem:[#allocation2 + $0x38] sm:$0xff]
    %v55 = vld [vmem:[#allocation2 + $0x40] sm:$0xff]
    %v56 = vld [vmem:[#allocation2 + $0x48] sm:$0xff]
    %v57 = vld [vmem:[#allocation2 + $0x50] sm:$0xff]
    %v58 = vld [vmem:[#allocation2 + $0x58] sm:$0xff]
    %v59 = vld [vmem:[#allocation2 + $0x60] sm:$0xff]
    %v60 = vld [vmem:[#allocation2 + $0x68] sm:$0xff]
    %v61 = vld [vmem:[#allocation2 + $0x70] sm:$0xff]
    %v62 = vld [vmem:[#allocation2 + $0x78] sm:$0xff]
    %v63 = vld [vmem:[#allocation2 + $0x80] sm:$0xff]
    %v64 = vld [vmem:[#allocation2 + $0x88] sm:$0xff]
    %v65 = vld [vmem:[#allocation2 + $0x90] sm:$0xff]
    %v66 = vld [vmem:[#allocation2 + $0x98] sm:$0xff]
    %v67 = vld [vmem:[#allocation2 + $0xa0] sm:$0xff]
    %v68 = vld [vmem:[#allocation2 + $0xa8] sm:$0xff]
    %v69 = vld [vmem:[#allocation2 + $0xb0] sm:$0xff]
    %v70 = vld [vmem:[#allocation2 + $0xb8] sm:$0xff]
    %v71 = vld [vmem:[#allocation2 + $0xc0] sm:$0xff]
    %v72 = vld [vmem:[#allocation2 + $0xc8] sm:$0xff]
    %v73 = vld [vmem:[#allocation2 + $0xd0] sm:$0xff]
    %v74 = vld [vmem:[#allocation2 + $0xd8] sm:$0xff]
    %v75 = vld [vmem:[#allocation2 + $0xe0] sm:$0xff]
    %v76 = vld [vmem:[#allocation2 + $0xe8] sm:$0xff]
    %v77 = vld [vmem:[#allocation2 + $0xf0] sm:$0xff]
    %v78 = vld [vmem:[#allocation2 + $0xf8] sm:$0xff]
    %v79 = vadd.f32 %v47, %v48
    %v80 = vadd.f32 %v79, %v49
    %v81 = vadd.f32 %v80, %v50
    %v82 = vadd.f32 %v81, %v51
    %v83 = vadd.f32 %v82, %v52
    %v84 = vadd.f32 %v83, %v53
    %v85 = vadd.f32 %v84, %v54
    %v86 = vadd.f32 %v85, %v55
    %v87 = vadd.f32 %v86, %v56
    %v88 = vadd.f32 %v87, %v57
    %v89 = vadd.f32 %v88, %v58
    %v90 = vadd.f32 %v89, %v59
    %v91 = vadd.f32 %v90, %v60
    %v92 = vadd.f32 %v91, %v61
    %v93 = vadd.f32 %v92, %v62
    %v94 = vadd.f32 %v93, %v63
    %v95 = vadd.f32 %v94, %v64
    %v96 = vadd.f32 %v95, %v65
    %v97 = vadd.f32 %v96, %v66
    %v98 = vadd.f32 %v97, %v67
    %v99 = vadd.f32 %v98, %v68
    %v100 = vadd.f32 %v99, %v69
    %v101 = vadd.f32 %v100, %v70
    %v102 = vadd.f32 %v101, %v71
    %v103 = vadd.f32 %v102, %v72
    %v104 = vadd.f32 %v103, %v73
    %v105 = vadd.f32 %v104, %v74
    %v106 = vadd.f32 %v105, %v75
    %v107 = vadd.f32 %v106, %v76
    %v108 = vadd.f32 %v107, %v77
    %v109 = vadd.f32 %v108, %v78
    %v110 = vrot.slane %v109, 4
    %v111 = vadd.f32 %v109, %v110
    %v112 = vrot.slane %v111, 2
    %v113 = vadd.f32 %v111, %v112
    %v114 = vrot.slane %v113, 1
    %v115 = vadd.f32 %v113, %v114
    %v116 = vmul.f32 %v115, 0.015625
    %v117 = vmul.f32 %v47, %v47
    %v118 = vmul.f32 %v48, %v48
    %v119 = vmul.f32 %v49, %v49
    %v120 = vmul.f32 %v50, %v50
    %v121 = vmul.f32 %v51, %v51
    %v122 = vmul.f32 %v52, %v52
    %v123 = vmul.f32 %v53, %v53
    %v124 = vmul.f32 %v54, %v54
    %v125 = vmul.f32 %v55, %v55
    %v126 = vmul.f32 %v56, %v56
    %v127 = vmul.f32 %v57, %v57
    %v128 = vmul.f32 %v58, %v58
    %v129 = vmul.f32 %v59, %v59
    %v130 = vmul.f32 %v60, %v60
    %v131 = vmul.f32 %v61, %v61
    %v132 = vmul.f32 %v62, %v62
    %v133 = vmul.f32 %v63, %v63
    %v134 = vmul.f32 %v64, %v64
    %v135 = vmul.f32 %v65, %v65
    %v136 = vmul.f32 %v66, %v66
    %v137 = vmul.f32 %v67, %v67
    %v138 = vmul.f32 %v68, %v68
    %v139 = vmul.f32 %v69, %v69
    %v140 = vmul.f32 %v70, %v70
    %v141 = vmul.f32 %v71, %v71
    %v142 = vmul.f32 %v72, %v72
    %v143 = vmul.f32 %v73, %v73
    %v144 = vmul.f32 %v74, %v74
    %v145 = vmul.f32 %v75, %v75
    %v146 = vmul.f32 %v76, %v76
    %v147 = vmul.f32 %v77, %v77
    %v148 = vmul.f32 %v78, %v78
    %v149 = vadd.f32 %v117, %v118
    %v150 = vadd.f32 %v149, %v119
    %v151 = vadd.f32 %v150, %v120
    %v152 = vadd.f32 %v151, %v121
    %v153 = vadd.f32 %v152, %v122
    %v154 = vadd.f32 %v153, %v123
    %v155 = vadd.f32 %v154, %v124
    %v156 = vadd.f32 %v155, %v125
    %v157 = vadd.f32 %v156, %v126
    %v158 = vadd.f32 %v157, %v127
    %v159 = vadd.f32 %v158, %v128
    %v160 = vadd.f32 %v159, %v129
    %v161 = vadd.f32 %v160, %v130
    %v162 = vadd.f32 %v161, %v131
    %v163 = vadd.f32 %v162, %v132
    %v164 = vadd.f32 %v163, %v133
    %v165 = vadd.f32 %v164, %v134
    %v166 = vadd.f32 %v165, %v135
    %v167 = vadd.f32 %v166, %v136
    %v168 = vadd.f32 %v167, %v137
    %v169 = vadd.f32 %v168, %v138
    %v170 = vadd.f32 %v169, %v139
    %v171 = vadd.f32 %v170, %v140
    %v172 = vadd.f32 %v171, %v141
    %v173 = vadd.f32 %v172, %v142
    %v174 = vadd.f32 %v173, %v143
    %v175 = vadd.f32 %v174, %v144
    %v176 = vadd.f32 %v175, %v145
    %v177 = vadd.f32 %v176, %v146
    %v178 = vadd.f32 %v177, %v147
    %v179 = vadd.f32 %v178, %v148
    %v180 = vrot.slane %v179, 4
    %v181 = vadd.f32 %v179, %v180
    %v182 = vrot.slane %v181, 2
    %v183 = vadd.f32 %v181, %v182
    %v184 = vrot.slane %v183, 1
    %v185 = vadd.f32 %v183, %v184
    %v186 = vmul.f32 %v185, 0.015625
    %v187 = vmul.f32 %v116, %v116
    %v188 = vsub.f32 %v186, %v187
    %v189 = vmax.f32 %v188, 0.0
    %v190 = vsub.f32 %v47, %v116
    %v191 = vsub.f32 %v48, %v116
    %v192 = vsub.f32 %v49, %v116
    %v193 = vsub.f32 %v50, %v116
    %v194 = vsub.f32 %v51, %v116
    %v195 = vsub.f32 %v52, %v116
    %v196 = vsub.f32 %v53, %v116
    %v197 = vsub.f32 %v54, %v116
    %v198 = vsub.f32 %v55, %v116
    %v199 = vsub.f32 %v56, %v116
    %v200 = vsub.f32 %v57, %v116
    %v201 = vsub.f32 %v58, %v116
    %v202 = vsub.f32 %v59, %v116
    %v203 = vsub.f32 %v60, %v116
    %v204 = vsub.f32 %v61, %v116
    %v205 = vsub.f32 %v62, %v116
    %v206 = vsub.f32 %v63, %v116
    %v207 = vsub.f32 %v64, %v116
    %v208 = vsub.f32 %v65, %v116
    %v209 = vsub.f32 %v66, %v116
    %v210 = vsub.f32 %v67, %v116
    %v211 = vsub.f32 %v68, %v116
    %v212 = vsub.f32 %v69, %v116
    %v213 = vsub.f32 %v70, %v116
    %v214 = vsub.f32 %v71, %v116
    %v215 = vsub.f32 %v72, %v116
    %v216 = vsub.f32 %v73, %v116
    %v217 = vsub.f32 %v74, %v116
    %v218 = vsub.f32 %v75, %v116
    %v219 = vsub.f32 %v76, %v116
    %v220 = vsub.f32 %v77, %v116
    %v221 = vsub.f32 %v78, %v116
    %v222 = vadd.f32 %v189, 1e-05
    %v223 = vrsqrt.pop %v222
    %v224 = vmul.f32 %v223, %v222
    %v225 = vmul.f32 %v224, %v223
    %v226 = vmul.f32 0.5, %v225
    %v227 = vsub.f32 1.5, %v226
    %v228 = vmul.f32 %v223, %v227
    %vm229 = vweird.f32 %v222
    %vm230 = vweird.f32 %v223
    %vm231 = vmor %vm229, %vm230
    %v232 = vsel %vm231, %v223, %v228
    %v233 = vmul.f32 %v190, %v232
    %v234 = vmul.f32 %v191, %v232
    %v235 = vmul.f32 %v192, %v232
    %v236 = vmul.f32 %v193, %v232
    %v237 = vmul.f32 %v194, %v232
    %v238 = vmul.f32 %v195, %v232
    %v239 = vmul.f32 %v196, %v232
    %v240 = vmul.f32 %v197, %v232
    %v241 = vmul.f32 %v198, %v232
    %v242 = vmul.f32 %v199, %v232
    %v243 = vmul.f32 %v200, %v232
    %v244 = vmul.f32 %v201, %v232
    %v245 = vmul.f32 %v202, %v232
    %v246 = vmul.f32 %v203, %v232
    %v247 = vmul.f32 %v204, %v232
    %v248 = vmul.f32 %v205, %v232
    %v249 = vmul.f32 %v206, %v232
    %v250 = vmul.f32 %v207, %v232
    %v251 = vmul.f32 %v208, %v232
    %v252 = vmul.f32 %v209, %v232
    %v253 = vmul.f32 %v210, %v232
    %v254 = vmul.f32 %v211, %v232
    %v255 = vmul.f32 %v212, %v232
    %v256 = vmul.f32 %v213, %v232
    %v257 = vmul.f32 %v214, %v232
    %v258 = vmul.f32 %v215, %v232
    %v259 = vmul.f32 %v216, %v232
    %v260 = vmul.f32 %v217, %v232
    %v261 = vmul.f32 %v218, %v232
    %v262 = vmul.f32 %v219, %v232
    %v263 = vmul.f32 %v220, %v232
    %v264 = vmul.f32 %v221, %v232
    %v265 = vld [vmem:[#allocation5] sm:$0xff]
    %v266 = vld [vmem:[#allocation5 + $0x8] sm:$0xff]
    %v267 = vld [vmem:[#allocation5 + $0x10] sm:$0xff]
    %v268 = vld [vmem:[#allocation5 + $0x18] sm:$0xff]
    %v269 = vld [vmem:[#allocation5 + $0x20] sm:$0xff]
    %v270 = vld [vmem:[#allocation5 + $0x28] sm:$0xff]
    %v271 = vld [vmem:[#allocation5 + $0x30] sm:$0xff]
    %v272 = vld [vmem:[#allocation5 + $0x38] sm:$0xff]
    %v273 = vld [vmem:[#allocation5 + $0x40] sm:$0xff]
    %v274 = vld [vmem:[#allocation5 + $0x48] sm:$0xff]
    %v275 = vld [vmem:[#allocation5 + $0x50] sm:$0xff]
    %v276 = vld [vmem:[#allocation5 + $0x58] sm:$0xff]
    %v277 = vld [vmem:[#allocation5 + $0x60] sm:$0xff]
    %v278 = vld [vmem:[#allocation5 + $0x68] sm:$0xff]
    %v279 = vld [vmem:[#allocation5 + $0x70] sm:$0xff]
    %v280 = vld [vmem:[#allocation5 + $0x78] sm:$0xff]
    %v281 = vld [vmem:[%s2] sm:$0x1]
    %v283 = vperm.slane %v281, 0
    %285 = vmatpush.msra.mxu0 %v280
    %286 = vmatpush.msra.mxu0 %v279
    %287 = vmatpush.msra.mxu0 %v278
    %288 = vmatpush.msra.mxu0 %v277
    %289 = vmatpush.msra.mxu0 %v276
    %290 = vmatpush.msra.mxu0 %v275
    %291 = vmatpush.msra.mxu0 %v274
    %292 = vmatpush.msra.mxu0 %v273
    %293 = vmatpush.msra.mxu0 %v272
    %294 = vmatpush.msra.mxu0 %v271
    %295 = vmatpush.msra.mxu0 %v270
    %296 = vmatpush.msra.mxu0 %v269
    %297 = vmatpush.msra.mxu0 %v268
    %298 = vmatpush.msra.mxu0 %v267
    %299 = vmatpush.msra.mxu0 %v266
    %300 = vmatpush.msra.mxu0 %v265
    %301 = vmatmul.f32.gmra.mxu0 %v233
    %v302 = vpop.f32.mrf.mxu0
    %v303 = vadd.f32 %v283, %v302
    %304 = vmatmul.f32.gmra.mxu0 %v234
    %v305 = vpop.f32.mrf.mxu0
    %v306 = vadd.f32 %v283, %v305
    %307 = vmatmul.f32.gmra.mxu0 %v235
    %v308 = vpop.f32.mrf.mxu0
    %v309 = vadd.f32 %v283, %v308
    %310 = vmatmul.f32.gmra.mxu0 %v236
    %v311 = vpop.f32.mrf.mxu0
    %v312 = vadd.f32 %v283, %v311
    %313 = vmatmul.f32.gmra.mxu0 %v237
    %v314 = vpop.f32.mrf.mxu0
    %v315 = vadd.f32 %v283, %v314
    %316 = vmatmul.f32.gmra.mxu0 %v238
    %v317 = vpop.f32.mrf.mxu0
    %v318 = vadd.f32 %v283, %v317
    %319 = vmatmul.f32.gmra.mxu0 %v239
    %v320 = vpop.f32.mrf.mxu0
    %v321 = vadd.f32 %v283, %v320
    %322 = vmatmul.f32.gmra.mxu0 %v240
    %v323 = vpop.f32.mrf.mxu0
    %v324 = vadd.f32 %v283, %v323
    %325 = vmatmul.f32.gmra.mxu0 %v241
    %v326 = vpop.f32.mrf.mxu0
    %v327 = vadd.f32 %v283, %v326
    %328 = vmatmul.f32.gmra.mxu0 %v242
    %v329 = vpop.f32.mrf.mxu0
    %v330 = vadd.f32 %v283, %v329
    %331 = vmatmul.f32.gmra.mxu0 %v243
    %v332 = vpop.f32.mrf.mxu0
    %v333 = vadd.f32 %v283, %v332
    %334 = vmatmul.f32.gmra.mxu0 %v244
    %v335 = vpop.f32.mrf.mxu0
    %v336 = vadd.f32 %v283, %v335
    %337 = vmatmul.f32.gmra.mxu0 %v245
    %v338 = vpop.f32.mrf.mxu0
    %v339 = vadd.f32 %v283, %v338
    %340 = vmatmul.f32.gmra.mxu0 %v246
    %v341 = vpop.f32.mrf.mxu0
    %v342 = vadd.f32 %v283, %v341
    %343 = vmatmul.f32.gmra.mxu0 %v247
    %v344 = vpop.f32.mrf.mxu0
    %v345 = vadd.f32 %v283, %v344
    %346 = vmatmul.f32.gmra.mxu0 %v248
    %v347 = vpop.f32.mrf.mxu0
    %v348 = vadd.f32 %v283, %v347
    %349 = vmatmul.f32.gmra.mxu0 %v249
    %v350 = vpop.f32.mrf.mxu0
    %v351 = vadd.f32 %v283, %v350
    %352 = vmatmul.f32.gmra.mxu0 %v250
    %v353 = vpop.f32.mrf.mxu0
    %v354 = vadd.f32 %v283, %v353
    %355 = vmatmul.f32.gmra.mxu0 %v251
    %v356 = vpop.f32.mrf.mxu0
    %v357 = vadd.f32 %v283, %v356
    %358 = vmatmul.f32.gmra.mxu0 %v252
    %v359 = vpop.f32.mrf.mxu0
    %v360 = vadd.f32 %v283, %v359
    %361 = vmatmul.f32.gmra.mxu0 %v253
    %v362 = vpop.f32.mrf.mxu0
    %v363 = vadd.f32 %v283, %v362
    %364 = vmatmul.f32.gmra.mxu0 %v254
    %v365 = vpop.f32.mrf.mxu0
    %v366 = vadd.f32 %v283, %v365
    %367 = vmatmul.f32.gmra.mxu0 %v255
    %v368 = vpop.f32.mrf.mxu0
    %v369 = vadd.f32 %v283, %v368
    %370 = vmatmul.f32.gmra.mxu0 %v256
    %v371 = vpop.f32.mrf.mxu0
    %v372 = vadd.f32 %v283, %v371
    %373 = vmatmul.f32.gmra.mxu0 %v257
    %v374 = vpop.f32.mrf.mxu0
    %v375 = vadd.f32 %v283, %v374
    %376 = vmatmul.f32.gmra.mxu0 %v258
    %v377 = vpop.f32.mrf.mxu0
    %v378 = vadd.f32 %v283, %v377
    %379 = vmatmul.f32.gmra.mxu0 %v259
    %v380 = vpop.f32.mrf.mxu0
    %v381 = vadd.f32 %v283, %v380
    %382 = vmatmul.f32.gmra.mxu0 %v260
    %v383 = vpop.f32.mrf.mxu0
    %v384 = vadd.f32 %v283, %v383
    %385 = vmatmul.f32.gmra.mxu0 %v261
    %v386 = vpop.f32.mrf.mxu0
    %v387 = vadd.f32 %v283, %v386
    %388 = vmatmul.f32.gmra.mxu0 %v262
    %v389 = vpop.f32.mrf.mxu0
    %v390 = vadd.f32 %v283, %v389
    %391 = vmatmul.f32.gmra.mxu0 %v263
    %v392 = vpop.f32.mrf.mxu0
    %v393 = vadd.f32 %v283, %v392
    %394 = vmatmul.f32.gmra.mxu0 %v264
    %v395 = vpop.f32.mrf.mxu0
    %v396 = vadd.f32 %v283, %v395
    %397 = vdwg.mxu0
    %v398 = vpack.c.bf16 %v303, %v303
    %v399 = vpack.c.bf16 %v306, %v306
    %v400 = vpack.c.bf16 %v309, %v309
    %v401 = vpack.c.bf16 %v312, %v312
    %v402 = vpack.c.bf16 %v315, %v315
    %v403 = vpack.c.bf16 %v318, %v318
    %v404 = vpack.c.bf16 %v321, %v321
    %v405 = vpack.c.bf16 %v324, %v324
    %v406 = vpack.c.bf16 %v327, %v327
    %v407 = vpack.c.bf16 %v330, %v330
    %v408 = vpack.c.bf16 %v333, %v333
    %v409 = vpack.c.bf16 %v336, %v336
    %v410 = vpack.c.bf16 %v339, %v339
    %v411 = vpack.c.bf16 %v342, %v342
    %v412 = vpack.c.bf16 %v345, %v345
    %v413 = vpack.c.bf16 %v348, %v348
    %v414 = vpack.c.bf16 %v351, %v351
    %v415 = vpack.c.bf16 %v354, %v354
    %v416 = vpack.c.bf16 %v357, %v357
    %v417 = vpack.c.bf16 %v360, %v360
    %v418 = vpack.c.bf16 %v363, %v363
    %v419 = vpack.c.bf16 %v366, %v366
    %v420 = vpack.c.bf16 %v369, %v369
    %v421 = vpack.c.bf16 %v372, %v372
    %v422 = vpack.c.bf16 %v375, %v375
    %v423 = vpack.c.bf16 %v378, %v378
    %v424 = vpack.c.bf16 %v381, %v381
    %v425 = vpack.c.bf16 %v384, %v384
    %v426 = vpack.c.bf16 %v387, %v387
    %v427 = vpack.c.bf16 %v390, %v390
    %v428 = vpack.c.bf16 %v393, %v393
    %v429 = vpack.c.bf16 %v396, %v396
    %430 = vst [vmem:[#allocation7] sm:$0xf] %v398
    %431 = vst [vmem:[#allocation7 + $0x4] sm:$0xf] %v399
    %432 = vst [vmem:[#allocation7 + $0x8] sm:$0xf] %v400
    %433 = vst [vmem:[#allocation7 + $0xc] sm:$0xf] %v401
    %434 = vst [vmem:[#allocation7 + $0x10] sm:$0xf] %v402
    %435 = vst [vmem:[#allocation7 + $0x14] sm:$0xf] %v403
    %436 = vst [vmem:[#allocation7 + $0x18] sm:$0xf] %v404
    %437 = vst [vmem:[#allocation7 + $0x1c] sm:$0xf] %v405
    %438 = vst [vmem:[#allocation7 + $0x20] sm:$0xf] %v406
    %439 = vst [vmem:[#allocation7 + $0x24] sm:$0xf] %v407
    %440 = vst [vmem:[#allocation7 + $0x28] sm:$0xf] %v408
    %441 = vst [vmem:[#allocation7 + $0x2c] sm:$0xf] %v409
    %442 = vst [vmem:[#allocation7 + $0x30] sm:$0xf] %v410
    %443 = vst [vmem:[#allocation7 + $0x34] sm:$0xf] %v411
    %444 = vst [vmem:[#allocation7 + $0x38] sm:$0xf] %v412
    %445 = vst [vmem:[#allocation7 + $0x3c] sm:$0xf] %v413
    %446 = vst [vmem:[#allocation7 + $0x40] sm:$0xf] %v414
    %447 = vst [vmem:[#allocation7 + $0x44] sm:$0xf] %v415
    %448 = vst [vmem:[#allocation7 + $0x48] sm:$0xf] %v416
    %449 = vst [vmem:[#allocation7 + $0x4c] sm:$0xf] %v417
    %450 = vst [vmem:[#allocation7 + $0x50] sm:$0xf] %v418
    %451 = vst [vmem:[#allocation7 + $0x54] sm:$0xf] %v419
    %452 = vst [vmem:[#allocation7 + $0x58] sm:$0xf] %v420
    %453 = vst [vmem:[#allocation7 + $0x5c] sm:$0xf] %v421
    %454 = vst [vmem:[#allocation7 + $0x60] sm:$0xf] %v422
    %455 = vst [vmem:[#allocation7 + $0x64] sm:$0xf] %v423
    %456 = vst [vmem:[#allocation7 + $0x68] sm:$0xf] %v424
    %457 = vst [vmem:[#allocation7 + $0x6c] sm:$0xf] %v425
    %458 = vst [vmem:[#allocation7 + $0x70] sm:$0xf] %v426
    %459 = vst [vmem:[#allocation7 + $0x74] sm:$0xf] %v427
    %460 = vst [vmem:[#allocation7 + $0x78] sm:$0xf] %v428
    %461 = vst [vmem:[#allocation7 + $0x7c] sm:$0xf] %v429
    // Predicated region
    $region22: #{tpu_custom_call.1} parent=1 // pred_check
      _
    $region23: #{tpu_custom_call.1} parent=1 // pred_check_branch
      %463 = sbr.rel (0) target = $region25
    $region24: #{tpu_custom_call.1} parent=1 // pred_region
      %465 = vsyncadd [#allocation4], 0
      %s466 = sshll.u32 [#allocation7], 4
      %s467 = int_to_ptr.vmem [resolvable:$true] %s466
      %s468 = sshll.u32 %s3, 4
      %s469 = int_to_ptr.hbm [resolvable:$true] %s468
      %474 = dma.vmem_to_hbm [thread:$0]  %s467, 2048, %s469, [#allocation4], 64, 64, 4
    $region25: #{tpu_custom_call.1} parent=1 // pred_fallthru
      _
    // Predicated region
    $region26: #{tpu_custom_call.1} parent=1 // pred_check
      _
    $region27: #{tpu_custom_call.1} parent=1 // pred_check_branch
      %476 = sbr.rel (0) target = $region29
    $region28: #{tpu_custom_call.1} parent=1 // pred_region
      %478 = dma.done [#allocation4], 2048
    $region29: #{tpu_custom_call.1} parent=1 // pred_fallthru
      _
    %479 = vsyncpa [#allocation3], 1
    %480 = vsyncpa [#allocation6], 1
    %481 = vsyncpa [#allocation4], 1

</llo_original>
